<compile_context>
chip_gen: v7x
topology: tpu7x:2x2x1
jax: 0.10.0
libtpu: 0.0.40
codegen_flags: <defaults>
</compile_context>

<pallas_src>
import jax
import jax.numpy as jnp
from jax.experimental import pallas as pl
from jax.experimental.pallas import tpu as pltpu


def _z_func_kernel(emb_ref, act_ref, w1e_ref, w1a_ref, b1_ref,
                   w2_ref, b2_ref, w3_ref, b3_ref, out_ref):
    # emb: [tb, De] f32, act: [tb, Da] f32 ; W1e/W1a/W2: bf16 ;
    # b1/b2/w3 row: f32 ; b3: SMEM scalar ; out: [1, 1, tb] f32 (lane-dense).

    # Layer 1: split matmul (no concat / no x materialization in HBM),
    # bf16 MXU inputs, f32 accumulation.
    h = (jnp.dot(emb_ref[...].astype(jnp.bfloat16), w1e_ref[...],
                 preferred_element_type=jnp.float32)
         + jnp.dot(act_ref[...].astype(jnp.bfloat16), w1a_ref[...],
                   preferred_element_type=jnp.float32)
         + b1_ref[...])
    h = jnp.maximum(h, 0.0)                                    # F.relu

    # Layer 2 (MXU, bf16 inputs, f32 accumulation).
    h = jnp.dot(h.astype(jnp.bfloat16), w2_ref[...],
                preferred_element_type=jnp.float32) + b2_ref[...]
    h = jnp.maximum(h, 0.0)                                    # F.relu

    # Layer 3: output width is 1, so skip the MXU (VPU mult + XLU lane reduce).
    # Result is a lane-major [tb] vector -> sigmoid packed, unmasked store.
    z = jnp.sum(h * w3_ref[...], axis=-1) + b3_ref[0, 0]       # [tb]
    out_ref[0, 0, :] = jax.nn.sigmoid(z)                       # F.sigmoid


def z_func_forward(emb, action, params, *, block_b=4096):
    """emb: [B, dim_emb], action: [B, dim_action] -> [B, 1] f32."""
    w1e, w1a, b1, w2, b2, w3_row, b3 = params

    emb = emb.astype(jnp.float32)
    action = action.astype(jnp.float32)
    B, d_e = emb.shape
    d_a = action.shape[1]
    h0 = w1e.shape[1]
    h1 = w2.shape[1]

    # Batch tile: as large as possible (amortize ~0.35us/step), but keep >= 2
    # grid steps when the batch allows so v7x's two TensorCores both get work.
    tb = min(block_b, B)
    if pl.cdiv(B, tb) < 2 and B >= 16:
        tb = ((pl.cdiv(B, 2) + 7) // 8) * 8
    num_blocks = pl.cdiv(B, tb)

    const2 = lambda i: (0, 0)   # weights/biases: same VMEM block every step

    flops = 2 * B * (d_e * h0 + d_a * h0 + h0 * h1 + h1)
    bytes_accessed = ((emb.size + action.size) * 4
                      + (w1e.size + w1a.size + w2.size) * 2
                      + (b1.size + b2.size + w3_row.size + b3.size) * 4
                      + num_blocks * tb * 4)

    out = pl.pallas_call(
        _z_func_kernel,
        out_shape=jax.ShapeDtypeStruct((num_blocks, 1, tb), jnp.float32),
        grid=(num_blocks,),
        in_specs=[
            pl.BlockSpec((tb, d_e), lambda i: (i, 0)),        # emb tile
            pl.BlockSpec((tb, d_a), lambda i: (i, 0)),        # action tile
            pl.BlockSpec((d_e, h0), const2),                  # W1_emb (bf16)
            pl.BlockSpec((d_a, h0), const2),                  # W1_act (bf16)
            pl.BlockSpec((1, h0), const2),                    # b1
            pl.BlockSpec((h0, h1), const2),                   # W2 (bf16)
            pl.BlockSpec((1, h1), const2),                    # b2
            pl.BlockSpec((1, h1), const2),                    # W3 as a row
            pl.BlockSpec(memory_space=pltpu.MemorySpace.SMEM),  # b3 scalar
        ],
        out_specs=pl.BlockSpec((1, 1, tb), lambda i: (i, 0, 0)),
        compiler_params=pltpu.CompilerParams(
            dimension_semantics=("parallel",),
            vmem_limit_bytes=48 * 1024 * 1024,   # < v7x 64 MiB; roomy on v5e/v6e
        ),
        cost_estimate=pl.CostEstimate(
            flops=flops, transcendentals=B, bytes_accessed=bytes_accessed),
    )(emb, action, w1e, w1a, b1, w2, b2, w3_row, b3)

    # Lane-dense kernel output -> logical [B, 1] (drop the ragged tail rows).
    return out.reshape(-1)[:B].reshape(B, 1)


def init_params(key, dim_emb, dim_action, dim_hidden):
    """Deterministic synthetic init mirroring nn.Linear shapes.

    l1: Linear(dim_emb + dim_action, dim_hidden[0])  (stored split: emb / act rows)
    l2: Linear(dim_hidden[0], dim_hidden[1])
    l3: Linear(dim_hidden[1], 1)
    Weights stored as [in, out] (transpose of PyTorch's [out, in]).
    W1_emb/W1_act/W2 cast to bf16 (MXU-native); biases + W3 row + b3 kept f32.
    """
    h0, h1 = dim_hidden
    k = jax.random.split(key, 6)

    def lin(kw, kb, fan_in, fan_out):
        bound = 1.0 / jnp.sqrt(jnp.float32(fan_in))
        w = jax.random.uniform(kw, (fan_in, fan_out), jnp.float32, -bound, bound)
        b = jax.random.uniform(kb, (1, fan_out), jnp.float32, -bound, bound)
        return w, b

    w1, b1 = lin(k[0], k[1], dim_emb + dim_action, h0)
    w2, b2 = lin(k[2], k[3], h0, h1)
    w3, b3 = lin(k[4], k[5], h1, 1)

    w1e = w1[:dim_emb].astype(jnp.bfloat16)    # [dim_emb, h0]
    w1a = w1[dim_emb:].astype(jnp.bfloat16)    # [dim_action, h0]
    w3_row = w3.T                              # [1, h1] — used on the VPU, f32
    b3 = b3.reshape(1, 1)                      # SMEM scalar
    return (w1e, w1a, b1, w2.astype(jnp.bfloat16), b2, w3_row, b3)


def reference_forward(emb, action, params):
    """Pure-JAX reference mirroring the kernel's bf16-matmul / f32-accum math."""
    w1e, w1a, b1, w2, b2, w3_row, b3 = params
    h = (jnp.dot(emb.astype(jnp.bfloat16), w1e,
                 preferred_element_type=jnp.float32)
         + jnp.dot(action.astype(jnp.bfloat16), w1a,
                   preferred_element_type=jnp.float32)
         + b1)
    h = jax.nn.relu(h)
    h = jnp.dot(h.astype(jnp.bfloat16), w2,
                preferred_element_type=jnp.float32) + b2
    h = jax.nn.relu(h)
    z = jnp.sum(h * w3_row, axis=-1, keepdims=True) + b3[0, 0]
    return jax.nn.sigmoid(z)


if __name__ == "__main__":
    B = 8
    dim_emb = 32
    dim_action = 8
    dim_hidden = (64, 64)

    key = jax.random.PRNGKey(0)
    k_emb, k_act, k_params = jax.random.split(key, 3)

    # emb_func(state) modeled as identity: state already lives in embedding space.
    emb = jax.random.normal(k_emb, (B, dim_emb), jnp.float32)
    action = jax.random.normal(k_act, (B, dim_action), jnp.float32)
    params = init_params(k_params, dim_emb, dim_action, dim_hidden)

    out = z_func_forward(emb, action, params)
    out = jax.block_until_ready(out)

    ref = reference_forward(emb, action, params)
    assert out.shape == (B, 1), out.shape
    assert jnp.allclose(out, ref, atol=1e-3, rtol=1e-3), (out, ref)

    print("KERNEL_OK")
</pallas_src>

<mosaic_0001>
module attributes {stable_mosaic.version = 11 : i64} {
  func.func @_z_func_kernel(%arg0: i32, %arg1: memref<8x32xf32, #tpu.memory_space<vmem>>, %arg2: memref<8x8xf32, #tpu.memory_space<vmem>>, %arg3: memref<32x64xbf16, #tpu.memory_space<vmem>>, %arg4: memref<8x64xbf16, #tpu.memory_space<vmem>>, %arg5: memref<1x64xf32, #tpu.memory_space<vmem>>, %arg6: memref<64x64xbf16, #tpu.memory_space<vmem>>, %arg7: memref<1x64xf32, #tpu.memory_space<vmem>>, %arg8: memref<1x64xf32, #tpu.memory_space<vmem>>, %arg9: memref<1x1xf32, #tpu.memory_space<smem>>, %arg10: memref<1x1x8xf32, #tpu.memory_space<vmem>>) attributes {dimension_semantics = [#tpu.dimension_semantics<parallel>], iteration_bounds = array<i64: 1>, scalar_prefetch = 0 : i64, scratch_operands = 0 : i64, tpu.core_type = #tpu.core_type<tc>, window_params = [{transform_indices = @transform_0, window_bounds = array<i64: 8, 32>}, {transform_indices = @transform_1, window_bounds = array<i64: 8, 8>}, {pipeline_mode = #tpu.pipeline_mode<synchronous>, transform_indices = @transform_2, window_bounds = array<i64: 32, 64>}, {pipeline_mode = #tpu.pipeline_mode<synchronous>, transform_indices = @transform_3, window_bounds = array<i64: 8, 64>}, {pipeline_mode = #tpu.pipeline_mode<synchronous>, transform_indices = @transform_4, window_bounds = array<i64: 1, 64>}, {pipeline_mode = #tpu.pipeline_mode<synchronous>, transform_indices = @transform_5, window_bounds = array<i64: 64, 64>}, {pipeline_mode = #tpu.pipeline_mode<synchronous>, transform_indices = @transform_6, window_bounds = array<i64: 1, 64>}, {pipeline_mode = #tpu.pipeline_mode<synchronous>, transform_indices = @transform_7, window_bounds = array<i64: 1, 64>}, {transform_indices = @transform_8, window_bounds = array<i64: 1, 1>}, {transform_indices = @transform_9, window_bounds = array<i64: 1, 1, 8>}]} {
    %c0 = arith.constant 0 : index
    %c0_0 = arith.constant 0 : index
    %0 = vector.load %arg1[%c0, %c0_0] : memref<8x32xf32, #tpu.memory_space<vmem>>, vector<8x32xf32>
    %1 = arith.truncf %0 : vector<8x32xf32> to vector<8x32xbf16>
    %c0_1 = arith.constant 0 : index
    %c0_2 = arith.constant 0 : index
    %2 = vector.load %arg3[%c0_1, %c0_2] : memref<32x64xbf16, #tpu.memory_space<vmem>>, vector<32x64xbf16>
    %cst = arith.constant dense<0.000000e+00> : vector<8x64xf32>
    %3 = tpu.matmul %1, %2, %cst {dimension_numbers = #tpu.dot_dimension_numbers<[1], [0], [0], [1], [0, 0, 1, 1], [], []>} : vector<8x32xbf16>, vector<32x64xbf16>, vector<8x64xf32> -> vector<8x64xf32>
    %c0_3 = arith.constant 0 : index
    %c0_4 = arith.constant 0 : index
    %4 = vector.load %arg2[%c0_3, %c0_4] : memref<8x8xf32, #tpu.memory_space<vmem>>, vector<8x8xf32>
    %5 = arith.truncf %4 : vector<8x8xf32> to vector<8x8xbf16>
    %c0_5 = arith.constant 0 : index
    %c0_6 = arith.constant 0 : index
    %6 = vector.load %arg4[%c0_5, %c0_6] : memref<8x64xbf16, #tpu.memory_space<vmem>>, vector<8x64xbf16>
    %cst_7 = arith.constant dense<0.000000e+00> : vector<8x64xf32>
    %7 = tpu.matmul %5, %6, %cst_7 {dimension_numbers = #tpu.dot_dimension_numbers<[1], [0], [0], [1], [0, 0, 1, 1], [], []>} : vector<8x8xbf16>, vector<8x64xbf16>, vector<8x64xf32> -> vector<8x64xf32>
    %8 = arith.addf %3, %7 : vector<8x64xf32>
    %c0_8 = arith.constant 0 : index
    %c0_9 = arith.constant 0 : index
    %9 = vector.load %arg5[%c0_8, %c0_9] : memref<1x64xf32, #tpu.memory_space<vmem>>, vector<1x64xf32>
    %10 = vector.broadcast %9 : vector<1x64xf32> to vector<8x64xf32>
    %11 = arith.addf %8, %10 : vector<8x64xf32>
    %cst_10 = arith.constant 0.000000e+00 : f32
    %12 = vector.broadcast %cst_10 : f32 to vector<8x64xf32>
    %13 = arith.maximumf %11, %12 : vector<8x64xf32>
    %14 = arith.truncf %13 : vector<8x64xf32> to vector<8x64xbf16>
    %c0_11 = arith.constant 0 : index
    %c0_12 = arith.constant 0 : index
    %15 = vector.load %arg6[%c0_11, %c0_12] : memref<64x64xbf16, #tpu.memory_space<vmem>>, vector<64x64xbf16>
    %cst_13 = arith.constant dense<0.000000e+00> : vector<8x64xf32>
    %16 = tpu.matmul %14, %15, %cst_13 {dimension_numbers = #tpu.dot_dimension_numbers<[1], [0], [0], [1], [0, 0, 1, 1], [], []>} : vector<8x64xbf16>, vector<64x64xbf16>, vector<8x64xf32> -> vector<8x64xf32>
    %c0_14 = arith.constant 0 : index
    %c0_15 = arith.constant 0 : index
    %17 = vector.load %arg7[%c0_14, %c0_15] : memref<1x64xf32, #tpu.memory_space<vmem>>, vector<1x64xf32>
    %18 = vector.broadcast %17 : vector<1x64xf32> to vector<8x64xf32>
    %19 = arith.addf %16, %18 : vector<8x64xf32>
    %cst_16 = arith.constant 0.000000e+00 : f32
    %20 = vector.broadcast %cst_16 : f32 to vector<8x64xf32>
    %21 = arith.maximumf %19, %20 : vector<8x64xf32>
    %c0_17 = arith.constant 0 : index
    %c0_18 = arith.constant 0 : index
    %22 = vector.load %arg8[%c0_17, %c0_18] : memref<1x64xf32, #tpu.memory_space<vmem>>, vector<1x64xf32>
    %23 = vector.broadcast %22 : vector<1x64xf32> to vector<8x64xf32>
    %24 = arith.mulf %21, %23 : vector<8x64xf32>
    %cst_19 = arith.constant dense<0.000000e+00> : vector<8xf32>
    %25 = vector.multi_reduction <add>, %24, %cst_19 [1] : vector<8x64xf32> to vector<8xf32>
    %c0_20 = arith.constant 0 : index
    %c0_21 = arith.constant 0 : index
    %26 = memref.load %arg9[%c0_20, %c0_21] : memref<1x1xf32, #tpu.memory_space<smem>>
    %27 = vector.broadcast %26 : f32 to vector<8xf32>
    %28 = arith.addf %25, %27 : vector<8xf32>
    %29 = arith.negf %28 : vector<8xf32>
    %30 = math.exp %29 : vector<8xf32>
    %cst_22 = arith.constant 1.000000e+00 : f32
    %31 = vector.broadcast %cst_22 : f32 to vector<8xf32>
    %32 = arith.addf %31, %30 : vector<8xf32>
    %33 = arith.divf %31, %32 : vector<8xf32>
    %c0_23 = arith.constant 0 : index
    %c0_24 = arith.constant 0 : index
    %c0_25 = arith.constant 0 : index
    %34 = vector.load %arg10[%c0_23, %c0_24, %c0_25] : memref<1x1x8xf32, #tpu.memory_space<vmem>>, vector<1x1x8xf32>
    %35 = vector.shape_cast %34 : vector<1x1x8xf32> to vector<8xf32>
    %36 = vector.shape_cast %33 : vector<8xf32> to vector<1x1x8xf32>
    tpu.vector_store %arg10[%c0_23, %c0_24, %c0_25], %36 {strides = array<i32>} : memref<1x1x8xf32, #tpu.memory_space<vmem>>, vector<1x1x8xf32>,
    return
  }
  func.func @transform_0(%arg0: i32) -> (i32, i32) {
    %c0_i32 = arith.constant 0 : i32
    %c0_i32_0 = arith.constant 0 : i32
    return %arg0, %c0_i32 : i32, i32
  }
  func.func @transform_1(%arg0: i32) -> (i32, i32) {
    %c0_i32 = arith.constant 0 : i32
    %c0_i32_0 = arith.constant 0 : i32
    return %arg0, %c0_i32 : i32, i32
  }
  func.func @transform_2(%arg0: i32) -> (i32, i32) {
    %c0_i32 = arith.constant 0 : i32
    %c0_i32_0 = arith.constant 0 : i32
    %c0_i32_1 = arith.constant 0 : i32
    return %c0_i32, %c0_i32_0 : i32, i32
  }
  func.func @transform_3(%arg0: i32) -> (i32, i32) {
    %c0_i32 = arith.constant 0 : i32
    %c0_i32_0 = arith.constant 0 : i32
    %c0_i32_1 = arith.constant 0 : i32
    return %c0_i32, %c0_i32_0 : i32, i32
  }
  func.func @transform_4(%arg0: i32) -> (i32, i32) {
    %c0_i32 = arith.constant 0 : i32
    %c0_i32_0 = arith.constant 0 : i32
    %c0_i32_1 = arith.constant 0 : i32
    return %c0_i32, %c0_i32_0 : i32, i32
  }
  func.func @transform_5(%arg0: i32) -> (i32, i32) {
    %c0_i32 = arith.constant 0 : i32
    %c0_i32_0 = arith.constant 0 : i32
    %c0_i32_1 = arith.constant 0 : i32
    return %c0_i32, %c0_i32_0 : i32, i32
  }
  func.func @transform_6(%arg0: i32) -> (i32, i32) {
    %c0_i32 = arith.constant 0 : i32
    %c0_i32_0 = arith.constant 0 : i32
    %c0_i32_1 = arith.constant 0 : i32
    return %c0_i32, %c0_i32_0 : i32, i32
  }
  func.func @transform_7(%arg0: i32) -> (i32, i32) {
    %c0_i32 = arith.constant 0 : i32
    %c0_i32_0 = arith.constant 0 : i32
    %c0_i32_1 = arith.constant 0 : i32
    return %c0_i32, %c0_i32_0 : i32, i32
  }
  func.func @transform_8(%arg0: i32) -> (i32, i32) {
    %c0_i32 = arith.constant 0 : i32
    %c0_i32_0 = arith.constant 0 : i32
    %c0_i32_1 = arith.constant 0 : i32
    return %c0_i32, %c0_i32_0 : i32, i32
  }
  func.func @transform_9(%arg0: i32) -> (i32, i32, i32) {
    %c0_i32 = arith.constant 0 : i32
    %c0_i32_0 = arith.constant 0 : i32
    %c0_i32_1 = arith.constant 0 : i32
    return %arg0, %c0_i32, %c0_i32_0 : i32, i32, i32
  }
}

</mosaic_0001>

<llo_original>
// kernel: tpu_custom_call.1
$region0: #{tpu_custom_call.1}
  #allocation0 [shape = 'u32[]', space=smem, size = 0x4, offset = 0x4, fixed_abs, tag = 'smem constant byte address 0x4 - core index']
  #allocation1 [shape = 'u32[144,128]{1,0:T(1,128)}', space=vmem, size = 0x12000, scoped, tag = 'internal scratch']
  #allocation2 [shape = 'f32[1,1]{1,0:T(1,128)S(6)}', space=smem, size = 0x200, scoped, tag = 'scoped memory for tpu_custom_call.1']
  %s0 = inlined_call_operand.hbm [shape: f32[8,32], index: 0, kind: input, shape index: {}]
  %s1 = inlined_call_operand.hbm [shape: f32[8,8], index: 1, kind: input, shape index: {}]
  %s2 = inlined_call_operand.hbm [shape: bf16[32,64], index: 2, kind: input, shape index: {}]
  %s3 = inlined_call_operand.vmem [shape: bf16[8,64], index: 3, kind: input, shape index: {}]
  %s4 = inlined_call_operand.vmem [shape: f32[1,64], index: 4, kind: input, shape index: {}]
  %s5 = inlined_call_operand.hbm [shape: bf16[64,64], index: 5, kind: input, shape index: {}]
  %s6 = inlined_call_operand.vmem [shape: f32[1,64], index: 6, kind: input, shape index: {}]
  %s7 = inlined_call_operand.vmem [shape: f32[1,64], index: 7, kind: input, shape index: {}]
  %s8 = inlined_call_operand.<no memory space> [shape: f32[1,1], index: 8, kind: input, shape index: {}]
  %s9 = inlined_call_operand.hbm [shape: f32[1,1,8], index: 9, kind: output, shape index: {}]
  %s10 = sld [smem:[#allocation0]]
  $region62: #{tpu_custom_call.1} parent=0
    _
  %s12 = ssub.s32 1, %s10
  %s13 = scalar_select 0, %s12, %s10
  %14 = sst [smem:[#allocation2]] %s8
  $region1: #{tpu_custom_call.1} parent=0
    #allocation3 [shape = 'u8[4096]{0}', space=vmem, size = 0x1000, scoped, tag = 'input window, operand 0, single buffered']
    #allocation4 [shape = 's32[1]{0}', space=sflag, size = 0x4, scoped, tag = 'scoped memory for tpu_custom_call.1']
    #allocation5 [shape = 's32[1]{0}', space=sflag, size = 0x4, scoped, tag = 'scoped memory for tpu_custom_call.1']
    #allocation6 [shape = 'u8[4096]{0}', space=vmem, size = 0x1000, scoped, tag = 'input window, operand 1, single buffered']
    #allocation7 [shape = 's32[1]{0}', space=sflag, size = 0x4, scoped, tag = 'scoped memory for tpu_custom_call.1']
    #allocation8 [shape = 'u8[8192]{0}', space=vmem, size = 0x2000, scoped, tag = 'input window, operand 2, single buffered']
    #allocation9 [shape = 'u8[16384]{0}', space=vmem, size = 0x4000, scoped, tag = 'input window, operand 5, single buffered']
    #allocation10 [shape = 's32[1]{0}', space=sflag, size = 0x4, scoped, tag = 'scoped memory for tpu_custom_call.1']
    #allocation11 [shape = 'u8[512]{0}', space=vmem, size = 0x400, scoped, tag = 'output window, operand 0, single buffered']
    %15 = vsyncpa [#allocation4], 0
    %16 = vsyncpa [#allocation7], 0
    %17 = vsyncpa [#allocation10], 0
    %18 = vsyncpa [#allocation5], 0
    // Predicated region
    $region2: #{tpu_custom_call.1} parent=1 // pred_check
      _
    $region3: #{tpu_custom_call.1} parent=1 // pred_check_branch
      %20 = sbr.rel (0) target = $region5
    $region4: #{tpu_custom_call.1} parent=1 // pred_region
      %s22 = ssub.s32 128, 128
      %23 = vsyncadd [#allocation4], %s22
      %s25 = sshll.u32 [#allocation3], 4
      %s26 = int_to_ptr.vmem [resolvable:$true] %s25
      %28 = dma.hbm_to_vmem [thread:$0]  %s0, 128, %s26, [#allocation4]
    $region5: #{tpu_custom_call.1} parent=1 // pred_fallthru
      _
    // Predicated region
    $region6: #{tpu_custom_call.1} parent=1 // pred_check
      _
    $region7: #{tpu_custom_call.1} parent=1 // pred_check_branch
      %30 = sbr.rel (0) target = $region9
    $region8: #{tpu_custom_call.1} parent=1 // pred_region
      %s32 = ssub.s32 128, 128
      %33 = vsyncadd [#allocation7], %s32
      %s35 = sshll.u32 [#allocation6], 4
      %s36 = int_to_ptr.vmem [resolvable:$true] %s35
      %38 = dma.hbm_to_vmem [thread:$0]  %s1, 128, %s36, [#allocation7]
    $region9: #{tpu_custom_call.1} parent=1 // pred_fallthru
      _
    // Predicated region
    $region10: #{tpu_custom_call.1} parent=1 // pred_check
      _
    $region11: #{tpu_custom_call.1} parent=1 // pred_check_branch
      %40 = sbr.rel (0) target = $region13
    $region12: #{tpu_custom_call.1} parent=1 // pred_region
      %s42 = ssub.s32 256, 256
      %43 = vsyncadd [#allocation7], %s42
      %s44 = sshll.u32 [#allocation8], 4
      %s45 = int_to_ptr.vmem [resolvable:$true] %s44
      %50 = dma.hbm_to_vmem [thread:$0]  %s2, 256, %s45, [#allocation7], 64, 64, 4
    $region13: #{tpu_custom_call.1} parent=1 // pred_fallthru
      _
    // Predicated region
    $region14: #{tpu_custom_call.1} parent=1 // pred_check
      _
    $region15: #{tpu_custom_call.1} parent=1 // pred_check_branch
      %52 = sbr.rel (0) target = $region17
    $region16: #{tpu_custom_call.1} parent=1 // pred_region
      _
    $region17: #{tpu_custom_call.1} parent=1 // pred_fallthru
      _
    // Predicated region
    $region18: #{tpu_custom_call.1} parent=1 // pred_check
      _
    $region19: #{tpu_custom_call.1} parent=1 // pred_check_branch
      %54 = sbr.rel (0) target = $region21
    $region20: #{tpu_custom_call.1} parent=1 // pred_region
      _
    $region21: #{tpu_custom_call.1} parent=1 // pred_fallthru
      _
    // Predicated region
    $region22: #{tpu_custom_call.1} parent=1 // pred_check
      _
    $region23: #{tpu_custom_call.1} parent=1 // pred_check_branch
      %56 = sbr.rel (0) target = $region25
    $region24: #{tpu_custom_call.1} parent=1 // pred_region
      %s58 = ssub.s32 512, 512
      %59 = vsyncadd [#allocation10], %s58
      %s60 = sshll.u32 [#allocation9], 4
      %s61 = int_to_ptr.vmem [resolvable:$true] %s60
      %66 = dma.hbm_to_vmem [thread:$0]  %s5, 512, %s61, [#allocation10], 64, 64, 4
    $region25: #{tpu_custom_call.1} parent=1 // pred_fallthru
      _
    // Predicated region
    $region26: #{tpu_custom_call.1} parent=1 // pred_check
      _
    $region27: #{tpu_custom_call.1} parent=1 // pred_check_branch
      %68 = sbr.rel (0) target = $region29
    $region28: #{tpu_custom_call.1} parent=1 // pred_region
      _
    $region29: #{tpu_custom_call.1} parent=1 // pred_fallthru
      _
    // Predicated region
    $region30: #{tpu_custom_call.1} parent=1 // pred_check
      _
    $region31: #{tpu_custom_call.1} parent=1 // pred_check_branch
      %70 = sbr.rel (0) target = $region33
    $region32: #{tpu_custom_call.1} parent=1 // pred_region
      _
    $region33: #{tpu_custom_call.1} parent=1 // pred_fallthru
      _
    // Predicated region
    $region34: #{tpu_custom_call.1} parent=1 // pred_check
      _
    $region35: #{tpu_custom_call.1} parent=1 // pred_check_branch
      %72 = sbr.rel (0) target = $region37
    $region36: #{tpu_custom_call.1} parent=1 // pred_region
      _
    $region37: #{tpu_custom_call.1} parent=1 // pred_fallthru
      _
    // Predicated region
    $region38: #{tpu_custom_call.1} parent=1 // pred_check
      _
    $region39: #{tpu_custom_call.1} parent=1 // pred_check_branch
      %74 = sbr.rel (0) target = $region41
    $region40: #{tpu_custom_call.1} parent=1 // pred_region
      %75 = dma.done [#allocation4], 128
    $region41: #{tpu_custom_call.1} parent=1 // pred_fallthru
      _
    // Predicated region
    $region42: #{tpu_custom_call.1} parent=1 // pred_check
      _
    $region43: #{tpu_custom_call.1} parent=1 // pred_check_branch
      %77 = sbr.rel (0) target = $region45
    $region44: #{tpu_custom_call.1} parent=1 // pred_region
      %78 = dma.done [#allocation7], 128
    $region45: #{tpu_custom_call.1} parent=1 // pred_fallthru
      _
    // Predicated region
    $region46: #{tpu_custom_call.1} parent=1 // pred_check
      _
    $region47: #{tpu_custom_call.1} parent=1 // pred_check_branch
      %80 = sbr.rel (0) target = $region49
    $region48: #{tpu_custom_call.1} parent=1 // pred_region
      %81 = dma.done [#allocation7], 256
    $region49: #{tpu_custom_call.1} parent=1 // pred_fallthru
      _
    // Predicated region
    $region50: #{tpu_custom_call.1} parent=1 // pred_check
      _
    $region51: #{tpu_custom_call.1} parent=1 // pred_check_branch
      %83 = sbr.rel (0) target = $region53
    $region52: #{tpu_custom_call.1} parent=1 // pred_region
      %84 = dma.done [#allocation10], 512
    $region53: #{tpu_custom_call.1} parent=1 // pred_fallthru
      _
    %v86 = vld [vmem:[#allocation3] sm:$0xff]
    %v87 = vpack.c.bf16 %v86, %v86
    %v88 = vld [vmem:[#allocation8] sm:$0xf]
    %v89 = vld [vmem:[#allocation8 + $0x4] sm:$0xf]
    %v90 = vld [vmem:[#allocation8 + $0x8] sm:$0xf]
    %v91 = vld [vmem:[#allocation8 + $0xc] sm:$0xf]
    %v92 = vld [vmem:[#allocation6] sm:$0xff]
    %v93 = vpack.c.bf16 %v92, %v92
    %v94 = vld [vmem:[%s3] sm:$0xf]
    %vm95 = vcmask 64512
    %v97 = vsel %vm95, %v93, 0
    %vm99 = vcmask 1043456
    %v101 = vsel %vm99, %v94, 0
    %103 = vmatprep.subr.bf16.mxu0 0
    %104 = vmatpush1.bf16.msra.mxu0 %v101
    %105 = vmatprep.subr.bf16.mxu0 0
    %106 = vmatpush1.bf16.msra.mxu0 0
    %107 = vmatprep.subr.bf16.mxu0 0
    %108 = vmatpush1.bf16.msra.mxu0 0
    %109 = vmatprep.subr.bf16.mxu0 0
    %110 = vmatpush1.bf16.msra.mxu0 0
    %111 = vmatprep.subr.bf16.mxu0 0
    %112 = vmatpush1.bf16.msra.mxu0 0
    %113 = vmatprep.subr.bf16.mxu0 0
    %114 = vmatpush1.bf16.msra.mxu0 0
    %115 = vmatprep.subr.bf16.mxu0 0
    %116 = vmatpush1.bf16.msra.mxu0 0
    %117 = vmatprep.subr.bf16.mxu0 0
    %118 = vmatpush1.bf16.msra.mxu0 0
    %119 = vmatprep.subr.bf16.mxu0 0
    %120 = vmatpush1.bf16.msra.mxu0 0
    %121 = vmatprep.subr.bf16.mxu0 0
    %122 = vmatpush1.bf16.msra.mxu0 0
    %123 = vmatprep.subr.bf16.mxu0 0
    %124 = vmatpush1.bf16.msra.mxu0 0
    %125 = vmatprep.subr.bf16.mxu0 0
    %126 = vmatpush1.bf16.msra.mxu0 0
    %127 = vmatprep.subr.bf16.mxu0 0
    %128 = vmatpush1.bf16.msra.mxu0 0
    %129 = vmatprep.subr.bf16.mxu0 0
    %130 = vmatpush1.bf16.msra.mxu0 0
    %131 = vmatprep.subr.bf16.mxu0 0
    %132 = vmatpush1.bf16.msra.mxu0 0
    %133 = vmatprep.subr.bf16.mxu0 0
    %134 = vmatpush1.bf16.msra.mxu0 0
    %135 = vmatprep.mubr.bf16.mxu0 0
    %136 = vmatmul.mubr.bf16.gmra.mrb[0].mxu0 %v97
    %v137 = vpop.f32.mrb[0].mxu0
    %v138 = vadd.f32 0.0, %v137
    %v139 = vpop.f32.mrb[0].mxu0
    %v140 = vpop.f32.mrb[0].mxu0
    %v141 = vpop.f32.mrb[0].mxu0
    %142 = vdwg.mxu0
    %v147 = vunpack.c.l.b16 %v88
    %v148 = vunpack.c.l.b16 %v89
    %v149 = vunpack.c.l.b16 %v90
    %v150 = vunpack.c.l.b16 %v91
    %v151 = vpack.c.b16 %v148, %v147
    %v152 = vpack.c.b16 %v150, %v149
    %vm155 = vcmask 261120
    %v157 = vsel %vm155, %v87, 0
    %159 = vmatprep.subr.bf16.mxu0 0
    %160 = vmatpush1.bf16.msra.mxu0 %v151
    %161 = vmatprep.subr.bf16.mxu0 0
    %162 = vmatpush1.bf16.msra.mxu0 %v152
    %163 = vmatprep.subr.bf16.mxu0 0
    %164 = vmatpush1.bf16.msra.mxu0 0
    %165 = vmatprep.subr.bf16.mxu0 0
    %166 = vmatpush1.bf16.msra.mxu0 0
    %167 = vmatprep.subr.bf16.mxu0 0
    %168 = vmatpush1.bf16.msra.mxu0 0
    %169 = vmatprep.subr.bf16.mxu0 0
    %170 = vmatpush1.bf16.msra.mxu0 0
    %171 = vmatprep.subr.bf16.mxu0 0
    %172 = vmatpush1.bf16.msra.mxu0 0
    %173 = vmatprep.subr.bf16.mxu0 0
    %174 = vmatpush1.bf16.msra.mxu0 0
    %175 = vmatprep.subr.bf16.mxu0 0
    %176 = vmatpush1.bf16.msra.mxu0 0
    %177 = vmatprep.subr.bf16.mxu0 0
    %178 = vmatpush1.bf16.msra.mxu0 0
    %179 = vmatprep.subr.bf16.mxu0 0
    %180 = vmatpush1.bf16.msra.mxu0 0
    %181 = vmatprep.subr.bf16.mxu0 0
    %182 = vmatpush1.bf16.msra.mxu0 0
    %183 = vmatprep.subr.bf16.mxu0 0
    %184 = vmatpush1.bf16.msra.mxu0 0
    %185 = vmatprep.subr.bf16.mxu0 0
    %186 = vmatpush1.bf16.msra.mxu0 0
    %187 = vmatprep.subr.bf16.mxu0 0
    %188 = vmatpush1.bf16.msra.mxu0 0
    %189 = vmatprep.subr.bf16.mxu0 0
    %190 = vmatpush1.bf16.msra.mxu0 0
    %191 = vmatprep.mubr.bf16.mxu0 0
    %192 = vmatmul.mubr.bf16.gmra.mrb[0].mxu0 %v157
    %v193 = vpop.f32.mrb[0].mxu0
    %v194 = vadd.f32 %v138, %v193
    %v195 = vpop.f32.mrb[0].mxu0
    %v196 = vpop.f32.mrb[0].mxu0
    %v197 = vpop.f32.mrb[0].mxu0
    %198 = vdwg.mxu0
    %v199 = vld [vmem:[%s4] sm:$0x1]
    %v201 = vlaneseq
    %v202 = vshrl.u32 %v201, 7
    %v203 = vsub.s32 0, %v202
    %v204 = vrot.slane %v199, %v203
    %v206 = vadd.f32 %v194, %v204
    %v207 = vmax.f32 %v206, 0.0
    %v208 = vpack.c.bf16 %v207, %v207
    %v209 = vld [vmem:[#allocation9] sm:$0xf]
    %v210 = vld [vmem:[#allocation9 + $0x4] sm:$0xf]
    %v211 = vld [vmem:[#allocation9 + $0x8] sm:$0xf]
    %v212 = vld [vmem:[#allocation9 + $0xc] sm:$0xf]
    %v213 = vld [vmem:[#allocation9 + $0x10] sm:$0xf]
    %v214 = vld [vmem:[#allocation9 + $0x14] sm:$0xf]
    %v215 = vld [vmem:[#allocation9 + $0x18] sm:$0xf]
    %v216 = vld [vmem:[#allocation9 + $0x1c] sm:$0xf]
    %v217 = vld [vmem:[%s6] sm:$0x1]
    %v219 = vlaneseq
    %v220 = vshrl.u32 %v219, 7
    %v221 = vsub.s32 0, %v220
    %v222 = vrot.slane %v217, %v221
    %v232 = vunpack.c.l.b16 %v209
    %v233 = vunpack.c.l.b16 %v210
    %v234 = vunpack.c.l.b16 %v211
    %v235 = vunpack.c.l.b16 %v212
    %v236 = vunpack.c.l.b16 %v213
    %v237 = vunpack.c.l.b16 %v214
    %v238 = vunpack.c.l.b16 %v215
    %v239 = vunpack.c.l.b16 %v216
    %v240 = vpack.c.b16 %v233, %v232
    %v241 = vpack.c.b16 %v235, %v234
    %v242 = vpack.c.b16 %v237, %v236
    %v243 = vpack.c.b16 %v239, %v238
    %vm248 = vcmask 523264
    %v250 = vsel %vm248, %v208, 0
    %252 = vmatprep.subr.bf16.mxu0 0
    %253 = vmatpush1.bf16.msra.mxu0 %v240
    %254 = vmatprep.subr.bf16.mxu0 0
    %255 = vmatpush1.bf16.msra.mxu0 %v241
    %256 = vmatprep.subr.bf16.mxu0 0
    %257 = vmatpush1.bf16.msra.mxu0 %v242
    %258 = vmatprep.subr.bf16.mxu0 0
    %259 = vmatpush1.bf16.msra.mxu0 %v243
    %260 = vmatprep.subr.bf16.mxu0 0
    %261 = vmatpush1.bf16.msra.mxu0 0
    %262 = vmatprep.subr.bf16.mxu0 0
    %263 = vmatpush1.bf16.msra.mxu0 0
    %264 = vmatprep.subr.bf16.mxu0 0
    %265 = vmatpush1.bf16.msra.mxu0 0
    %266 = vmatprep.subr.bf16.mxu0 0
    %267 = vmatpush1.bf16.msra.mxu0 0
    %268 = vmatprep.subr.bf16.mxu0 0
    %269 = vmatpush1.bf16.msra.mxu0 0
    %270 = vmatprep.subr.bf16.mxu0 0
    %271 = vmatpush1.bf16.msra.mxu0 0
    %272 = vmatprep.subr.bf16.mxu0 0
    %273 = vmatpush1.bf16.msra.mxu0 0
    %274 = vmatprep.subr.bf16.mxu0 0
    %275 = vmatpush1.bf16.msra.mxu0 0
    %276 = vmatprep.subr.bf16.mxu0 0
    %277 = vmatpush1.bf16.msra.mxu0 0
    %278 = vmatprep.subr.bf16.mxu0 0
    %279 = vmatpush1.bf16.msra.mxu0 0
    %280 = vmatprep.subr.bf16.mxu0 0
    %281 = vmatpush1.bf16.msra.mxu0 0
    %282 = vmatprep.subr.bf16.mxu0 0
    %283 = vmatpush1.bf16.msra.mxu0 0
    %284 = vmatprep.mubr.bf16.mxu0 0
    %285 = vmatmul.mubr.bf16.gmra.mrb[0].mxu0 %v250
    %v286 = vpop.f32.mrb[0].mxu0
    %v287 = vadd.f32 %v222, %v286
    %v288 = vpop.f32.mrb[0].mxu0
    %v289 = vpop.f32.mrb[0].mxu0
    %v290 = vpop.f32.mrb[0].mxu0
    %291 = vdwg.mxu0
    %v292 = vmax.f32 %v287, 0.0
    %v293 = vld [vmem:[%s7] sm:$0x1]
    %v295 = vlaneseq
    %v296 = vshrl.u32 %v295, 7
    %v297 = vsub.s32 0, %v296
    %v298 = vrot.slane %v293, %v297
    %v300 = vmul.f32 %v292, %v298
    %v301 = vsel %vm248, %v300, 0.0
    %302 = vadd.xlane.f32.xlu0 %v301
    %v303 = vpop.xlane.xlu0 %302
    %s304 = sld [smem:[#allocation2]]
    %v305 = vstv %s304
    %v306 = vadd.f32 %v303, %v305
    %v307 = vxor.u32 %v306, 2147483648
    %v308 = vmul.f32 %v307, 1.442695
    %v309 = vpow.pop %v308
    %v310 = vadd.f32 %v309, 1.0
    %v311 = vrcp.pop %v310
    %v312 = vmul.f32 1.0, %v311
    %v314 = vlaneseq
    %v315 = vand.u32 %v314, 127
    %v316 = vlaneseq
    %v317 = vshrl.u32 %v316, 7
    %v318 = vsub.s32 %v315, %v317
    %v319 = vrot.slane %v312, %v318
    %vm321 = vcmask 57344
    %322 = vst.msk [vmem:[#allocation11] sm:$0x1] %vm321, %v319
    // Predicated region
    $region54: #{tpu_custom_call.1} parent=1 // pred_check
      _
    $region55: #{tpu_custom_call.1} parent=1 // pred_check_branch
      %324 = sbr.rel (0) target = $region57
    $region56: #{tpu_custom_call.1} parent=1 // pred_region
      %s326 = ssub.s32 16, 16
      %327 = vsyncadd [#allocation5], %s326
      %s329 = sshll.u32 [#allocation11], 4
      %s330 = int_to_ptr.vmem [resolvable:$true] %s329
      %332 = dma.vmem_to_hbm [thread:$0]  %s330, 16, %s9, [#allocation5]
    $region57: #{tpu_custom_call.1} parent=1 // pred_fallthru
      _
    // Predicated region
    $region58: #{tpu_custom_call.1} parent=1 // pred_check
      _
    $region59: #{tpu_custom_call.1} parent=1 // pred_check_branch
      %334 = sbr.rel (0) target = $region61
    $region60: #{tpu_custom_call.1} parent=1 // pred_region
      %335 = dma.done [#allocation5], 16
    $region61: #{tpu_custom_call.1} parent=1 // pred_fallthru
      _
    %336 = vsyncpa [#allocation4], 1
    %337 = vsyncpa [#allocation7], 1
    %338 = vsyncpa [#allocation10], 1
    %339 = vsyncpa [#allocation5], 1

</llo_original>
